<compile_context>
chip_gen: v5e
topology: v5e:2x2
jax: 0.10.0
libtpu: 0.0.40
codegen_flags: <defaults>
</compile_context>

<pallas_src>
import jax
import jax.numpy as jnp
from jax.experimental import pallas as pl
from jax.experimental.pallas import tpu as pltpu

_LANE = 128  # TPU vreg lane width


def _embed_kernel(x_ref, w1_ref, b1_ref, w2_ref, b2_ref, o_ref):
    """Fused embedding for one Siamese branch (one grid step), all in VMEM.

    o = relu(x @ W1 + b1) @ W2p + b2p   (W2p/b2p lane-padded to a 128 multiple)
    """
    x = x_ref[...]                                                   # (B, d_in)
    h = jnp.dot(x, w1_ref[...], preferred_element_type=jnp.float32) + b1_ref[...]
    h = jnp.maximum(h, 0.0)                                          # ReLU on VPU
    o = jnp.dot(h, w2_ref[...], preferred_element_type=jnp.float32) + b2_ref[...]
    o_ref[...] = o.astype(o_ref.dtype)                               # lane-dense store


def _embed_stack(x_stack, w1, b1, w2p, b2p):
    """Apply the shared-weight embedding to P stacked branch inputs in ONE call.

    x_stack : (P, B, d_in) float32
    returns : (P, B, d_out_pad) float32  (lane-dense; caller slices to d_out)
    """
    P, B, d_in = x_stack.shape
    hid = w1.shape[1]
    d_out_pad = w2p.shape[1]

    return pl.pallas_call(
        _embed_kernel,
        out_shape=jax.ShapeDtypeStruct((P, B, d_out_pad), jnp.float32),
        grid=(P,),
        in_specs=[
            # One branch per grid step; leading pair axis squeezed out.
            pl.BlockSpec((None, B, d_in), lambda s: (s, 0, 0)),
            # Shared weights: constant block index -> loaded once, stays resident.
            pl.BlockSpec((d_in, hid), lambda s: (0, 0)),
            pl.BlockSpec((1, hid), lambda s: (0, 0)),
            pl.BlockSpec((hid, d_out_pad), lambda s: (0, 0)),
            pl.BlockSpec((1, d_out_pad), lambda s: (0, 0)),
        ],
        out_specs=pl.BlockSpec((None, B, d_out_pad), lambda s: (s, 0, 0)),
        compiler_params=pltpu.CompilerParams(
            # Branches are independent: shard across TensorCores on v7x.
            dimension_semantics=("parallel",),
        ),
    )(x_stack, w1, b1, w2p, b2p)


class SiameseNet:
    """JAX/Pallas mirror of the PyTorch SiameseNet wrapper (shared weights)."""

    def __init__(self, params):
        w1, b1, w2, b2 = params
        self.d_out = w2.shape[1]
        # Lane-dense padding of the output projection, done ONCE here.
        d_out_pad = max(_LANE, pl.cdiv(self.d_out, _LANE) * _LANE)
        pad = d_out_pad - self.d_out
        self._w1 = w1
        self._b1 = b1
        self._w2p = jnp.pad(w2, ((0, 0), (0, pad)))
        self._b2p = jnp.pad(b2, ((0, 0), (0, pad)))

    def _flatten(self, x):
        B = x.shape[0]
        xf = x.reshape(B, -1)                      # NCHW -> (B, C*H*W)
        if xf.dtype != jnp.float32:
            xf = xf.astype(jnp.float32)
        return xf

    def forward(self, x1, x2):
        # Single fused pallas_call for BOTH branches (shared weights).
        x_stack = jnp.stack([self._flatten(x1), self._flatten(x2)], axis=0)
        out = _embed_stack(x_stack, self._w1, self._b1, self._w2p, self._b2p)
        out = out[:, :, : self.d_out]              # drop lane padding
        return out[0], out[1]

    def get_embedding(self, x):
        x_stack = self._flatten(x)[None]           # (1, B, d_in)
        out = _embed_stack(x_stack, self._w1, self._b1, self._w2p, self._b2p)
        return out[0, :, : self.d_out]


def init_params(key, d_in, hidden, d_out):
    k1, k2, k3, k4 = jax.random.split(key, 4)
    w1 = jax.random.normal(k1, (d_in, hidden), jnp.float32) * 0.05
    b1 = jax.random.normal(k2, (1, hidden), jnp.float32) * 0.01
    w2 = jax.random.normal(k3, (hidden, d_out), jnp.float32) * 0.05
    b2 = jax.random.normal(k4, (1, d_out), jnp.float32) * 0.01
    return (w1, b1, w2, b2)


if __name__ == "__main__":
    key = jax.random.PRNGKey(0)
    kx1, kx2, kp = jax.random.split(key, 3)

    # Small NCHW image pair, consistent with a Siamese forward pass.
    B, C, Hs, Ws = 8, 1, 16, 16
    D_IN, HID, D_OUT = C * Hs * Ws, 128, 32

    x1 = jax.random.normal(kx1, (B, C, Hs, Ws), jnp.float32)
    x2 = jax.random.normal(kx2, (B, C, Hs, Ws), jnp.float32)
    params = init_params(kp, D_IN, HID, D_OUT)

    net = SiameseNet(params)
    o1, o2 = net.forward(x1, x2)
    e1 = net.get_embedding(x1)
    jax.block_until_ready((o1, o2, e1))

    # Pure-JAX reference check of the fused kernel.
    def ref(x):
        xf = x.reshape(B, -1)
        h = jnp.maximum(xf @ params[0] + params[1], 0.0)
        return h @ params[2] + params[3]

    assert o1.shape == (B, D_OUT) and o2.shape == (B, D_OUT)
    assert jnp.allclose(o1, ref(x1), atol=1e-4), "branch-1 mismatch"
    assert jnp.allclose(o2, ref(x2), atol=1e-4), "branch-2 mismatch"
    assert jnp.allclose(e1, ref(x1), atol=1e-4), "get_embedding mismatch"
    print("KERNEL_OK")
</pallas_src>

<mosaic_0001>
module attributes {stable_mosaic.version = 11 : i64} {
  func.func @_embed_kernel(%arg0: i32, %arg1: memref<1x8x256xf32, #tpu.memory_space<vmem>>, %arg2: memref<256x128xf32, #tpu.memory_space<vmem>>, %arg3: memref<1x128xf32, #tpu.memory_space<vmem>>, %arg4: memref<128x128xf32, #tpu.memory_space<vmem>>, %arg5: memref<1x128xf32, #tpu.memory_space<vmem>>, %arg6: memref<1x8x128xf32, #tpu.memory_space<vmem>>) attributes {dimension_semantics = [#tpu.dimension_semantics<parallel>], iteration_bounds = array<i64: 2>, scalar_prefetch = 0 : i64, scratch_operands = 0 : i64, tpu.core_type = #tpu.core_type<tc>, window_params = [{transform_indices = @transform_0, window_bounds = array<i64: 1, 8, 256>}, {pipeline_mode = #tpu.pipeline_mode<synchronous>, transform_indices = @transform_1, window_bounds = array<i64: 256, 128>}, {pipeline_mode = #tpu.pipeline_mode<synchronous>, transform_indices = @transform_2, window_bounds = array<i64: 1, 128>}, {pipeline_mode = #tpu.pipeline_mode<synchronous>, transform_indices = @transform_3, window_bounds = array<i64: 128, 128>}, {pipeline_mode = #tpu.pipeline_mode<synchronous>, transform_indices = @transform_4, window_bounds = array<i64: 1, 128>}, {transform_indices = @transform_5, window_bounds = array<i64: 1, 8, 128>}]} {
    %c0 = arith.constant 0 : index
    %c0_0 = arith.constant 0 : index
    %c0_1 = arith.constant 0 : index
    %0 = vector.load %arg1[%c0, %c0_0, %c0_1] : memref<1x8x256xf32, #tpu.memory_space<vmem>>, vector<1x8x256xf32>
    %1 = vector.shape_cast %0 : vector<1x8x256xf32> to vector<8x256xf32>
    %c0_2 = arith.constant 0 : index
    %c0_3 = arith.constant 0 : index
    %2 = vector.load %arg2[%c0_2, %c0_3] : memref<256x128xf32, #tpu.memory_space<vmem>>, vector<256x128xf32>
    %cst = arith.constant dense<0.000000e+00> : vector<8x128xf32>
    %3 = tpu.matmul %1, %2, %cst {dimension_numbers = #tpu.dot_dimension_numbers<[1], [0], [0], [1], [0, 0, 1, 1], [], []>} : vector<8x256xf32>, vector<256x128xf32>, vector<8x128xf32> -> vector<8x128xf32>
    %c0_4 = arith.constant 0 : index
    %c0_5 = arith.constant 0 : index
    %4 = vector.load %arg3[%c0_4, %c0_5] : memref<1x128xf32, #tpu.memory_space<vmem>>, vector<1x128xf32>
    %5 = vector.broadcast %4 : vector<1x128xf32> to vector<8x128xf32>
    %6 = arith.addf %3, %5 : vector<8x128xf32>
    %cst_6 = arith.constant 0.000000e+00 : f32
    %7 = vector.broadcast %cst_6 : f32 to vector<8x128xf32>
    %8 = arith.maximumf %6, %7 : vector<8x128xf32>
    %c0_7 = arith.constant 0 : index
    %c0_8 = arith.constant 0 : index
    %9 = vector.load %arg4[%c0_7, %c0_8] : memref<128x128xf32, #tpu.memory_space<vmem>>, vector<128x128xf32>
    %cst_9 = arith.constant dense<0.000000e+00> : vector<8x128xf32>
    %10 = tpu.matmul %8, %9, %cst_9 {dimension_numbers = #tpu.dot_dimension_numbers<[1], [0], [0], [1], [0, 0, 1, 1], [], []>} : vector<8x128xf32>, vector<128x128xf32>, vector<8x128xf32> -> vector<8x128xf32>
    %c0_10 = arith.constant 0 : index
    %c0_11 = arith.constant 0 : index
    %11 = vector.load %arg5[%c0_10, %c0_11] : memref<1x128xf32, #tpu.memory_space<vmem>>, vector<1x128xf32>
    %12 = vector.broadcast %11 : vector<1x128xf32> to vector<8x128xf32>
    %13 = arith.addf %10, %12 : vector<8x128xf32>
    %c0_12 = arith.constant 0 : index
    %c0_13 = arith.constant 0 : index
    %c0_14 = arith.constant 0 : index
    %14 = vector.load %arg6[%c0_12, %c0_13, %c0_14] : memref<1x8x128xf32, #tpu.memory_space<vmem>>, vector<1x8x128xf32>
    %15 = vector.shape_cast %14 : vector<1x8x128xf32> to vector<8x128xf32>
    %16 = vector.shape_cast %13 : vector<8x128xf32> to vector<1x8x128xf32>
    tpu.vector_store %arg6[%c0_12, %c0_13, %c0_14], %16 {strides = array<i32>} : memref<1x8x128xf32, #tpu.memory_space<vmem>>, vector<1x8x128xf32>,
    return
  }
  func.func @transform_0(%arg0: i32) -> (i32, i32, i32) {
    %c0_i32 = arith.constant 0 : i32
    %c0_i32_0 = arith.constant 0 : i32
    %c0_i32_1 = arith.constant 0 : i32
    return %arg0, %c0_i32, %c0_i32_0 : i32, i32, i32
  }
  func.func @transform_1(%arg0: i32) -> (i32, i32) {
    %c0_i32 = arith.constant 0 : i32
    %c0_i32_0 = arith.constant 0 : i32
    %c0_i32_1 = arith.constant 0 : i32
    return %c0_i32, %c0_i32_0 : i32, i32
  }
  func.func @transform_2(%arg0: i32) -> (i32, i32) {
    %c0_i32 = arith.constant 0 : i32
    %c0_i32_0 = arith.constant 0 : i32
    %c0_i32_1 = arith.constant 0 : i32
    return %c0_i32, %c0_i32_0 : i32, i32
  }
  func.func @transform_3(%arg0: i32) -> (i32, i32) {
    %c0_i32 = arith.constant 0 : i32
    %c0_i32_0 = arith.constant 0 : i32
    %c0_i32_1 = arith.constant 0 : i32
    return %c0_i32, %c0_i32_0 : i32, i32
  }
  func.func @transform_4(%arg0: i32) -> (i32, i32) {
    %c0_i32 = arith.constant 0 : i32
    %c0_i32_0 = arith.constant 0 : i32
    %c0_i32_1 = arith.constant 0 : i32
    return %c0_i32, %c0_i32_0 : i32, i32
  }
  func.func @transform_5(%arg0: i32) -> (i32, i32, i32) {
    %c0_i32 = arith.constant 0 : i32
    %c0_i32_0 = arith.constant 0 : i32
    %c0_i32_1 = arith.constant 0 : i32
    return %arg0, %c0_i32, %c0_i32_0 : i32, i32, i32
  }
}

</mosaic_0001>

<llo_original>
// kernel: tpu_custom_call.1
$region0: #{tpu_custom_call.1}
  #allocation0 [shape = 'u32[]', space=smem, size = 0x4, offset = 0x4, fixed_abs, tag = 'smem constant byte address 0x4 - core index']
  #allocation1 [shape = 'u32[72,128]{1,0:T(1,128)}', space=vmem, size = 0x9000, scoped, tag = 'internal scratch']
  %s0 = inlined_call_operand.hbm [shape: f32[2,8,256], index: 0, kind: input, shape index: {}]
  %s1 = inlined_call_operand.hbm [shape: f32[256,128], index: 1, kind: input, shape index: {}]
  %s2 = inlined_call_operand.vmem [shape: f32[1,128], index: 2, kind: input, shape index: {}]
  %s3 = inlined_call_operand.hbm [shape: f32[128,128], index: 3, kind: input, shape index: {}]
  %s4 = inlined_call_operand.vmem [shape: f32[1,128], index: 4, kind: input, shape index: {}]
  %s5 = inlined_call_operand.hbm [shape: f32[2,8,128], index: 5, kind: output, shape index: {}]
  %s6 = sld [smem:[#allocation0]]
  $region65: #{tpu_custom_call.1} parent=0
    _
  %s8 = ssub.s32 1, %s6
  %s9 = scalar_select 0, %s8, %s6
  $region1: #{tpu_custom_call.1} parent=0
    #allocation2 [shape = 'u8[16384]{0}', space=vmem, size = 0x4000, scoped, tag = 'input window, operand 0']
    #allocation3 [shape = 's32[2]{0}', space=sflag, size = 0x8, scoped, tag = 'scoped memory for tpu_custom_call.1']
    #allocation4 [shape = 's32[2]{0}', space=sflag, size = 0x8, scoped, tag = 'scoped memory for tpu_custom_call.1']
    #allocation5 [shape = 'u8[131072]{0}', space=vmem, size = 0x20000, scoped, tag = 'input window, operand 1, single buffered']
    #allocation6 [shape = 's32[1]{0}', space=sflag, size = 0x4, scoped, tag = 'scoped memory for tpu_custom_call.1']
    #allocation7 [shape = 'u8[65536]{0}', space=vmem, size = 0x10000, scoped, tag = 'input window, operand 3, single buffered']
    #allocation8 [shape = 'u8[8192]{0}', space=vmem, size = 0x2000, scoped, tag = 'output window, operand 0']
    %10 = vsyncpa [#allocation3], 0
    %s11 = scalar_lea.sflag [#allocation3], 1
    %12 = vsyncpa %s11, 0
    %13 = vsyncpa [#allocation6], 0
    %14 = vsyncpa [#allocation4], 0
    %s15 = scalar_lea.sflag [#allocation4], 1
    %16 = vsyncpa %s15, 0
    loop: start=0, step=1, limit=4
    $region2: #{tpu_custom_call.1} parent=1 // loop_pre_header
      _
    $region3: #{tpu_custom_call.1} parent=1 // loop_header
      %s18 = sphi 0, %s22
      %p19 = scmp.ge.s32.totalorder %s18, 4
      %s28 = sphi 0, %s30
      %s31 = sphi 0, %s28
      %s32 = sphi 0, %s31
      %s48 = sphi 0, %s32
      %s52 = sphi 0, %s52
      %s54 = sphi 0, %s52
      %s55 = sphi 0, %s54
      %s69 = sphi 0, %s55
      %s73 = sphi 0, %s73
      %s75 = sphi 0, %s73
      %s76 = sphi 0, %s75
      %s90 = sphi 0, %s76
      %s94 = sphi 0, %s94
      %s96 = sphi 0, %s94
      %s97 = sphi 0, %s96
      %s111 = sphi 0, %s97
      %s115 = sphi 0, %s115
      %s117 = sphi 0, %s115
      %s118 = sphi 0, %s117
      %s132 = sphi 0, %s118
      %s138 = sphi 0, %s140
      %s141 = sphi 0, %s138
      %s142 = sphi 0, %s141
      %s158 = sphi 0, %s142
    $region4: #{tpu_custom_call.1} parent=1 // loop_header_branch
      %21 = sbr.rel (%p19) target = $region8
    $region5: #{tpu_custom_call.1} parent=1 // loop_body
      %s23 = ssub.s32 %s18, 1
      %s24 = ssub.s32 %s18, 2
      %s25 = sadd.s32 %s18, 1
      %s26 = ssub.s32 %s18, %s25
      %p27 = scmp.eq.s32.totalorder %s26, 0
      %s29 = sadd.s32 %s28, 1
      %s30 = scalar_select %p27, %s28, %s29
      %p33 = pneg %p27
      %p34 = scmp.eq.s32.totalorder %s18, 1
      %p35 = por %p33, %p34
      %p36 = scmp.ne.s32.totalorder %s28, %s31
      %p37 = scmp.eq.s32.totalorder %s18, 0
      %p38 = por %p36, %p37
      %p39 = scmp.ne.s32.totalorder %s28, %s31
      %p40 = scmp.eq.s32.totalorder %s23, 1
      %p41 = por %p39, %p40
      %p42 = scmp.ne.s32.totalorder %s31, %s32
      %p43 = scmp.eq.s32.totalorder %s23, 0
      %p44 = por %p42, %p43
      %p45 = scmp.ne.s32.totalorder %s31, %s32
      %p46 = scmp.eq.s32.totalorder %s24, 1
      %p47 = por %p45, %p46
      %p49 = scmp.ne.s32.totalorder %s32, %s48
      %p50 = scmp.eq.s32.totalorder %s24, 0
      %p51 = por %p49, %p50
      %s53 = sadd.s32 %s52, 1
      %p56 = scmp.eq.s32.totalorder %s18, 1
      %p57 = scmp.ne.s32.totalorder %s52, %s54
      %p58 = scmp.eq.s32.totalorder %s18, 0
      %p59 = por %p57, %p58
      %p60 = scmp.ne.s32.totalorder %s52, %s54
      %p61 = scmp.eq.s32.totalorder %s23, 1
      %p62 = por %p60, %p61
      %p63 = scmp.ne.s32.totalorder %s54, %s55
      %p64 = scmp.eq.s32.totalorder %s23, 0
      %p65 = por %p63, %p64
      %p66 = scmp.ne.s32.totalorder %s54, %s55
      %p67 = scmp.eq.s32.totalorder %s24, 1
      %p68 = por %p66, %p67
      %p70 = scmp.ne.s32.totalorder %s55, %s69
      %p71 = scmp.eq.s32.totalorder %s24, 0
      %p72 = por %p70, %p71
      %s74 = sadd.s32 %s73, 1
      %p77 = scmp.eq.s32.totalorder %s18, 1
      %p78 = scmp.ne.s32.totalorder %s73, %s75
      %p79 = scmp.eq.s32.totalorder %s18, 0
      %p80 = por %p78, %p79
      %p81 = scmp.ne.s32.totalorder %s73, %s75
      %p82 = scmp.eq.s32.totalorder %s23, 1
      %p83 = por %p81, %p82
      %p84 = scmp.ne.s32.totalorder %s75, %s76
      %p85 = scmp.eq.s32.totalorder %s23, 0
      %p86 = por %p84, %p85
      %p87 = scmp.ne.s32.totalorder %s75, %s76
      %p88 = scmp.eq.s32.totalorder %s24, 1
      %p89 = por %p87, %p88
      %p91 = scmp.ne.s32.totalorder %s76, %s90
      %p92 = scmp.eq.s32.totalorder %s24, 0
      %p93 = por %p91, %p92
      %s95 = sadd.s32 %s94, 1
      %p98 = scmp.eq.s32.totalorder %s18, 1
      %p99 = scmp.ne.s32.totalorder %s94, %s96
      %p100 = scmp.eq.s32.totalorder %s18, 0
      %p101 = por %p99, %p100
      %p102 = scmp.ne.s32.totalorder %s94, %s96
      %p103 = scmp.eq.s32.totalorder %s23, 1
      %p104 = por %p102, %p103
      %p105 = scmp.ne.s32.totalorder %s96, %s97
      %p106 = scmp.eq.s32.totalorder %s23, 0
      %p107 = por %p105, %p106
      %p108 = scmp.ne.s32.totalorder %s96, %s97
      %p109 = scmp.eq.s32.totalorder %s24, 1
      %p110 = por %p108, %p109
      %p112 = scmp.ne.s32.totalorder %s97, %s111
      %p113 = scmp.eq.s32.totalorder %s24, 0
      %p114 = por %p112, %p113
      %s116 = sadd.s32 %s115, 1
      %p119 = scmp.eq.s32.totalorder %s18, 1
      %p120 = scmp.ne.s32.totalorder %s115, %s117
      %p121 = scmp.eq.s32.totalorder %s18, 0
      %p122 = por %p120, %p121
      %p123 = scmp.ne.s32.totalorder %s115, %s117
      %p124 = scmp.eq.s32.totalorder %s23, 1
      %p125 = por %p123, %p124
      %p126 = scmp.ne.s32.totalorder %s117, %s118
      %p127 = scmp.eq.s32.totalorder %s23, 0
      %p128 = por %p126, %p127
      %p129 = scmp.ne.s32.totalorder %s117, %s118
      %p130 = scmp.eq.s32.totalorder %s24, 1
      %p131 = por %p129, %p130
      %p133 = scmp.ne.s32.totalorder %s118, %s132
      %p134 = scmp.eq.s32.totalorder %s24, 0
      %p135 = por %p133, %p134
      %s136 = ssub.s32 %s18, %s25
      %p137 = scmp.eq.s32.totalorder %s136, 0
      %s139 = sadd.s32 %s138, 1
      %s140 = scalar_select %p137, %s138, %s139
      %p143 = pneg %p137
      %p144 = scmp.eq.s32.totalorder %s18, 1
      %p145 = por %p143, %p144
      %p146 = scmp.ne.s32.totalorder %s138, %s141
      %p147 = scmp.eq.s32.totalorder %s18, 0
      %p148 = por %p146, %p147
      %p149 = scmp.ne.s32.totalorder %s138, %s141
      %p150 = scmp.eq.s32.totalorder %s23, 1
      %p151 = por %p149, %p150
      %p152 = scmp.ne.s32.totalorder %s141, %s142
      %p153 = scmp.eq.s32.totalorder %s23, 0
      %p154 = por %p152, %p153
      %p155 = scmp.ne.s32.totalorder %s141, %s142
      %p156 = scmp.eq.s32.totalorder %s24, 1
      %p157 = por %p155, %p156
      %p159 = scmp.ne.s32.totalorder %s142, %s158
      %p160 = scmp.eq.s32.totalorder %s24, 0
      %p161 = por %p159, %p160
      %p162 = scmp.le.s32.totalorder 1, %s18
      %p163 = scmp.lt.s32.totalorder %s18, 3
      %p164 = pnand %p162, %p163
      %p165 = pneg %p164
      // Predicated region
      $region9: #{tpu_custom_call.1} parent=5 // pred_check
        _
      $region10: #{tpu_custom_call.1} parent=5 // pred_check_branch
        %167 = sbr.rel (%p164) target = $region12
      $region11: #{tpu_custom_call.1} parent=5 // pred_region
        %s168 = ssub.s32 %s18, 1
        // Predicated region
        $region13: #{tpu_custom_call.1} parent=11 // pred_check
          %p169 = pneg %p65
        $region14: #{tpu_custom_call.1} parent=11 // pred_check_branch
          %171 = sbr.rel (%p169) target = $region16
        $region15: #{tpu_custom_call.1} parent=11 // pred_region
          %173 = vsyncadd [#allocation6], 0
          %s174 = sshll.u32 %s1, 4
          %s175 = int_to_ptr.hbm [resolvable:$true] %s174
          %s176 = sshll.u32 [#allocation5], 4
          %s177 = int_to_ptr.vmem [resolvable:$true] %s176
          %182 = dma.hbm_to_vmem [thread:$0]  %s175, 4096, %s177, [#allocation6], 128, 128, 8
        $region16: #{tpu_custom_call.1} parent=11 // pred_fallthru
          _
        // Predicated region
        $region17: #{tpu_custom_call.1} parent=11 // pred_check
          %p183 = pneg %p86
        $region18: #{tpu_custom_call.1} parent=11 // pred_check_branch
          %185 = sbr.rel (%p183) target = $region20
        $region19: #{tpu_custom_call.1} parent=11 // pred_region
          _
        $region20: #{tpu_custom_call.1} parent=11 // pred_fallthru
          _
        // Predicated region
        $region21: #{tpu_custom_call.1} parent=11 // pred_check
          %p186 = pneg %p107
        $region22: #{tpu_custom_call.1} parent=11 // pred_check_branch
          %188 = sbr.rel (%p186) target = $region24
        $region23: #{tpu_custom_call.1} parent=11 // pred_region
          %190 = vsyncadd [#allocation6], 0
          %s191 = sshll.u32 %s3, 4
          %s192 = int_to_ptr.hbm [resolvable:$true] %s191
          %s193 = sshll.u32 [#allocation7], 4
          %s194 = int_to_ptr.vmem [resolvable:$true] %s193
          %199 = dma.hbm_to_vmem [thread:$0]  %s192, 2048, %s194, [#allocation6], 128, 128, 8
        $region24: #{tpu_custom_call.1} parent=11 // pred_fallthru
          _
        // Predicated region
        $region25: #{tpu_custom_call.1} parent=11 // pred_check
          %p200 = pneg %p128
        $region26: #{tpu_custom_call.1} parent=11 // pred_check_branch
          %202 = sbr.rel (%p200) target = $region28
        $region27: #{tpu_custom_call.1} parent=11 // pred_region
          _
        $region28: #{tpu_custom_call.1} parent=11 // pred_fallthru
          _
      $region12: #{tpu_custom_call.1} parent=5 // pred_fallthru
        _
      %p203 = scmp.lt.s32.totalorder %s18, 2
      // Predicated region
      $region29: #{tpu_custom_call.1} parent=5 // pred_check
        %p204 = pneg %p203
      $region30: #{tpu_custom_call.1} parent=5 // pred_check_branch
        %206 = sbr.rel (%p204) target = $region32
      $region31: #{tpu_custom_call.1} parent=5 // pred_region
        // Predicated region
        $region33: #{tpu_custom_call.1} parent=31 // pred_check
          %p207 = pneg %p38
        $region34: #{tpu_custom_call.1} parent=31 // pred_check_branch
          %209 = sbr.rel (%p207) target = $region36
        $region35: #{tpu_custom_call.1} parent=31 // pred_region
          %s210 = sand.u32 %s28, 1
          %s211 = scalar_lea.sflag [#allocation3], %s210
          %s212 = sand.u32 %s28, 1
          %s213 = smul.addr %s212, 16
          %s214 = scalar_lea.vmem [#allocation2], %s213
          %216 = vsyncadd %s211, 0
          %s217 = smul.addr %s18, 2
          %s218 = smul.addr %s217, 8
          %s219 = scalar_lea.hbm %s0, %s218
          %s221 = sshll.u32 %s219, 4
          %s222 = int_to_ptr.hbm [resolvable:$true] %s221
          %s223 = sshll.u32 %s214, 4
          %s224 = int_to_ptr.vmem [resolvable:$true] %s223
          %226 = dma.hbm_to_vmem [thread:$0]  %s222, 256, %s224, %s211
        $region36: #{tpu_custom_call.1} parent=31 // pred_fallthru
          _
      $region32: #{tpu_custom_call.1} parent=5 // pred_fallthru
        _
      %p227 = scmp.le.s32.totalorder 1, %s18
      %p228 = scmp.lt.s32.totalorder %s18, 3
      %p229 = pnand %p227, %p228
      %p230 = pneg %p229
      // Predicated region
      $region37: #{tpu_custom_call.1} parent=5 // pred_check
        _
      $region38: #{tpu_custom_call.1} parent=5 // pred_check_branch
        %232 = sbr.rel (%p229) target = $region40
      $region39: #{tpu_custom_call.1} parent=5 // pred_region
        %s233 = ssub.s32 %s18, 1
        %s234 = sand.u32 %s31, 1
        %s235 = scalar_lea.sflag [#allocation3], %s234
        %s236 = sand.u32 %s31, 1
        %s237 = smul.addr %s236, 16
        %s238 = scalar_lea.vmem [#allocation2], %s237
        // Predicated region
        $region41: #{tpu_custom_call.1} parent=39 // pred_check
          %p239 = pneg %p44
        $region42: #{tpu_custom_call.1} parent=39 // pred_check_branch
          %241 = sbr.rel (%p239) target = $region44
        $region43: #{tpu_custom_call.1} parent=39 // pred_region
          %243 = dma.done %s235, 256
        $region44: #{tpu_custom_call.1} parent=39 // pred_fallthru
          _
        // Predicated region
        $region45: #{tpu_custom_call.1} parent=39 // pred_check
          %p244 = pneg %p65
        $region46: #{tpu_custom_call.1} parent=39 // pred_check_branch
          %246 = sbr.rel (%p244) target = $region48
        $region47: #{tpu_custom_call.1} parent=39 // pred_region
          %248 = dma.done [#allocation6], 4096
        $region48: #{tpu_custom_call.1} parent=39 // pred_fallthru
          _
        // Predicated region
        $region49: #{tpu_custom_call.1} parent=39 // pred_check
          %p249 = pneg %p107
        $region50: #{tpu_custom_call.1} parent=39 // pred_check_branch
          %251 = sbr.rel (%p249) target = $region52
        $region51: #{tpu_custom_call.1} parent=39 // pred_region
          %253 = dma.done [#allocation6], 2048
        $region52: #{tpu_custom_call.1} parent=39 // pred_fallthru
          _
        %s254 = sand.u32 %s31, 1
        %s255 = scalar_lea.sflag [#allocation3], %s254
        %s256 = sand.u32 %s31, 1
        %s257 = smul.addr %s256, 16
        %s258 = scalar_lea.vmem [#allocation2], %s257
        %p259 = pneg %p44
        %p260 = pneg %p41
        %p261 = pneg %p65
        %p262 = pneg %p62
        %p263 = pneg %p86
        %p264 = pneg %p83
        %p265 = pneg %p107
        %p266 = pneg %p104
        %p267 = pneg %p128
        %p268 = pneg %p125
        %p269 = pneg %p154
        %p270 = pneg %p151
        %s271 = sand.u32 %s141, 1
        %s272 = scalar_lea.sflag [#allocation4], %s271
        %s273 = sand.u32 %s141, 1
        %s274 = smul.addr %s273, 8
        %s275 = scalar_lea.vmem [#allocation8], %s274
        %v276 = vld [vmem:[%s238] sm:$0xff]
        %v277 = vld [vmem:[%s238 + $0x8] sm:$0xff]
        %v278 = vld [vmem:[#allocation5] sm:$0xff]
        %v279 = vld [vmem:[#allocation5 + $0x8] sm:$0xff]
        %v280 = vld [vmem:[#allocation5 + $0x10] sm:$0xff]
        %v281 = vld [vmem:[#allocation5 + $0x18] sm:$0xff]
        %v282 = vld [vmem:[#allocation5 + $0x20] sm:$0xff]
        %v283 = vld [vmem:[#allocation5 + $0x28] sm:$0xff]
        %v284 = vld [vmem:[#allocation5 + $0x30] sm:$0xff]
        %v285 = vld [vmem:[#allocation5 + $0x38] sm:$0xff]
        %v286 = vld [vmem:[#allocation5 + $0x40] sm:$0xff]
        %v287 = vld [vmem:[#allocation5 + $0x48] sm:$0xff]
        %v288 = vld [vmem:[#allocation5 + $0x50] sm:$0xff]
        %v289 = vld [vmem:[#allocation5 + $0x58] sm:$0xff]
        %v290 = vld [vmem:[#allocation5 + $0x60] sm:$0xff]
        %v291 = vld [vmem:[#allocation5 + $0x68] sm:$0xff]
        %v292 = vld [vmem:[#allocation5 + $0x70] sm:$0xff]
        %v293 = vld [vmem:[#allocation5 + $0x78] sm:$0xff]
        %v294 = vld [vmem:[#allocation5 + $0x80] sm:$0xff]
        %v295 = vld [vmem:[#allocation5 + $0x88] sm:$0xff]
        %v296 = vld [vmem:[#allocation5 + $0x90] sm:$0xff]
        %v297 = vld [vmem:[#allocation5 + $0x98] sm:$0xff]
        %v298 = vld [vmem:[#allocation5 + $0xa0] sm:$0xff]
        %v299 = vld [vmem:[#allocation5 + $0xa8] sm:$0xff]
        %v300 = vld [vmem:[#allocation5 + $0xb0] sm:$0xff]
        %v301 = vld [vmem:[#allocation5 + $0xb8] sm:$0xff]
        %v302 = vld [vmem:[#allocation5 + $0xc0] sm:$0xff]
        %v303 = vld [vmem:[#allocation5 + $0xc8] sm:$0xff]
        %v304 = vld [vmem:[#allocation5 + $0xd0] sm:$0xff]
        %v305 = vld [vmem:[#allocation5 + $0xd8] sm:$0xff]
        %v306 = vld [vmem:[#allocation5 + $0xe0] sm:$0xff]
        %v307 = vld [vmem:[#allocation5 + $0xe8] sm:$0xff]
        %v308 = vld [vmem:[#allocation5 + $0xf0] sm:$0xff]
        %v309 = vld [vmem:[#allocation5 + $0xf8] sm:$0xff]
        %v310 = vld [vmem:[%s2] sm:$0x1]
        %v312 = vperm.slane %v310, 0
        %314 = vmatpush.msra.mxu0 %v293
        %315 = vmatpush.msra.mxu0 %v292
        %316 = vmatpush.msra.mxu0 %v291
        %317 = vmatpush.msra.mxu0 %v290
        %318 = vmatpush.msra.mxu0 %v289
        %319 = vmatpush.msra.mxu0 %v288
        %320 = vmatpush.msra.mxu0 %v287
        %321 = vmatpush.msra.mxu0 %v286
        %322 = vmatpush.msra.mxu0 %v285
        %323 = vmatpush.msra.mxu0 %v284
        %324 = vmatpush.msra.mxu0 %v283
        %325 = vmatpush.msra.mxu0 %v282
        %326 = vmatpush.msra.mxu0 %v281
        %327 = vmatpush.msra.mxu0 %v280
        %328 = vmatpush.msra.mxu0 %v279
        %329 = vmatpush.msra.mxu0 %v278
        %330 = vmatmul.f32.gmra.mxu0 %v276
        %v331 = vpop.f32.mrf.mxu0
        %v332 = vadd.f32 %v312, %v331
        %333 = vdwg.mxu0
        %334 = vmatpush.msra.mxu0 %v309
        %335 = vmatpush.msra.mxu0 %v308
        %336 = vmatpush.msra.mxu0 %v307
        %337 = vmatpush.msra.mxu0 %v306
        %338 = vmatpush.msra.mxu0 %v305
        %339 = vmatpush.msra.mxu0 %v304
        %340 = vmatpush.msra.mxu0 %v303
        %341 = vmatpush.msra.mxu0 %v302
        %342 = vmatpush.msra.mxu0 %v301
        %343 = vmatpush.msra.mxu0 %v300
        %344 = vmatpush.msra.mxu0 %v299
        %345 = vmatpush.msra.mxu0 %v298
        %346 = vmatpush.msra.mxu0 %v297
        %347 = vmatpush.msra.mxu0 %v296
        %348 = vmatpush.msra.mxu0 %v295
        %349 = vmatpush.msra.mxu0 %v294
        %350 = vmatmul.f32.gmra.mxu0 %v277
        %v351 = vpop.f32.mrf.mxu0
        %v352 = vadd.f32 %v332, %v351
        %353 = vdwg.mxu0
        %v354 = vmax.f32 %v352, 0.0
        %v355 = vld [vmem:[#allocation7] sm:$0xff]
        %v356 = vld [vmem:[#allocation7 + $0x8] sm:$0xff]
        %v357 = vld [vmem:[#allocation7 + $0x10] sm:$0xff]
        %v358 = vld [vmem:[#allocation7 + $0x18] sm:$0xff]
        %v359 = vld [vmem:[#allocation7 + $0x20] sm:$0xff]
        %v360 = vld [vmem:[#allocation7 + $0x28] sm:$0xff]
        %v361 = vld [vmem:[#allocation7 + $0x30] sm:$0xff]
        %v362 = vld [vmem:[#allocation7 + $0x38] sm:$0xff]
        %v363 = vld [vmem:[#allocation7 + $0x40] sm:$0xff]
        %v364 = vld [vmem:[#allocation7 + $0x48] sm:$0xff]
        %v365 = vld [vmem:[#allocation7 + $0x50] sm:$0xff]
        %v366 = vld [vmem:[#allocation7 + $0x58] sm:$0xff]
        %v367 = vld [vmem:[#allocation7 + $0x60] sm:$0xff]
        %v368 = vld [vmem:[#allocation7 + $0x68] sm:$0xff]
        %v369 = vld [vmem:[#allocation7 + $0x70] sm:$0xff]
        %v370 = vld [vmem:[#allocation7 + $0x78] sm:$0xff]
        %v371 = vld [vmem:[%s4] sm:$0x1]
        %v373 = vperm.slane %v371, 0
        %375 = vmatpush.msra.mxu0 %v370
        %376 = vmatpush.msra.mxu0 %v369
        %377 = vmatpush.msra.mxu0 %v368
        %378 = vmatpush.msra.mxu0 %v367
        %379 = vmatpush.msra.mxu0 %v366
        %380 = vmatpush.msra.mxu0 %v365
        %381 = vmatpush.msra.mxu0 %v364
        %382 = vmatpush.msra.mxu0 %v363
        %383 = vmatpush.msra.mxu0 %v362
        %384 = vmatpush.msra.mxu0 %v361
        %385 = vmatpush.msra.mxu0 %v360
        %386 = vmatpush.msra.mxu0 %v359
        %387 = vmatpush.msra.mxu0 %v358
        %388 = vmatpush.msra.mxu0 %v357
        %389 = vmatpush.msra.mxu0 %v356
        %390 = vmatpush.msra.mxu0 %v355
        %391 = vmatmul.f32.gmra.mxu0 %v354
        %v392 = vpop.f32.mrf.mxu0
        %v393 = vadd.f32 %v373, %v392
        %394 = vdwg.mxu0
        %395 = vst [vmem:[%s275] sm:$0xff] %v393
        %s396 = sand.u32 %s141, 1
        %s397 = scalar_lea.sflag [#allocation4], %s396
        %s398 = sand.u32 %s141, 1
        %s399 = smul.addr %s398, 8
        %s400 = scalar_lea.vmem [#allocation8], %s399
        // Predicated region
        $region53: #{tpu_custom_call.1} parent=39 // pred_check
          %p401 = pneg %p151
        $region54: #{tpu_custom_call.1} parent=39 // pred_check_branch
          %403 = sbr.rel (%p401) target = $region56
        $region55: #{tpu_custom_call.1} parent=39 // pred_region
          %405 = vsyncadd %s397, 0
          %s406 = smul.addr %s23, 8
          %s407 = scalar_lea.hbm %s5, %s406
          %s409 = sshll.u32 %s400, 4
          %s410 = int_to_ptr.vmem [resolvable:$true] %s409
          %s411 = sshll.u32 %s407, 4
          %s412 = int_to_ptr.hbm [resolvable:$true] %s411
          %414 = dma.vmem_to_hbm [thread:$0]  %s410, 128, %s412, %s397
        $region56: #{tpu_custom_call.1} parent=39 // pred_fallthru
          _
      $region40: #{tpu_custom_call.1} parent=5 // pred_fallthru
        _
      %p415 = scmp.le.s32.totalorder 2, %s18
      // Predicated region
      $region57: #{tpu_custom_call.1} parent=5 // pred_check
        %p416 = pneg %p415
      $region58: #{tpu_custom_call.1} parent=5 // pred_check_branch
        %418 = sbr.rel (%p416) target = $region60
      $region59: #{tpu_custom_call.1} parent=5 // pred_region
        %s419 = ssub.s32 %s18, 2
        // Predicated region
        $region61: #{tpu_custom_call.1} parent=59 // pred_check
          %p420 = pneg %p157
        $region62: #{tpu_custom_call.1} parent=59 // pred_check_branch
          %422 = sbr.rel (%p420) target = $region64
        $region63: #{tpu_custom_call.1} parent=59 // pred_region
          %s423 = sand.u32 %s142, 1
          %s424 = scalar_lea.sflag [#allocation4], %s423
          %s425 = sand.u32 %s142, 1
          %s426 = smul.addr %s425, 8
          %s427 = scalar_lea.vmem [#allocation8], %s426
          %429 = dma.done %s424, 128
        $region64: #{tpu_custom_call.1} parent=59 // pred_fallthru
          _
      $region60: #{tpu_custom_call.1} parent=5 // pred_fallthru
        _
    $region6: #{tpu_custom_call.1} parent=1 // loop_footer
      %s22 = sadd.s32 1, %s18
    $region7: #{tpu_custom_call.1} parent=1 // loop_footer_branch
      %17 = sbr.rel target = $region3
    $region8: #{tpu_custom_call.1} parent=1 // loop_exit
      _
    %430 = vsyncpa [#allocation3], 1
    %s431 = scalar_lea.sflag [#allocation3], 1
    %432 = vsyncpa %s431, 1
    %433 = vsyncpa [#allocation6], 1
    %434 = vsyncpa [#allocation4], 1
    %s435 = scalar_lea.sflag [#allocation4], 1
    %436 = vsyncpa %s435, 1

</llo_original>
